<compile_context>
chip_gen: v5e
topology: v5e:2x2
jax: 0.10.0
libtpu: 0.0.40
codegen_flags: <defaults>
</compile_context>

<pallas_src>
import jax
import jax.numpy as jnp
from jax.experimental import pallas as pl
from jax.experimental.pallas import tpu as pltpu

LANE = 128


def _round_up(x, m):
    return (x + m - 1) // m * m


def qnetwork_kernel(x_ref, w1_ref, b1_ref, w2_ref, b2_ref, w3_ref, b3_ref, o_ref):
    # x tile: [TILE_B, S] bf16; weights bf16 (VMEM-resident); biases f32.
    x = x_ref[...]
    h1 = jnp.dot(x, w1_ref[...], preferred_element_type=jnp.float32) + b1_ref[...]
    h1 = jnp.maximum(h1, 0.0)
    h2 = jnp.dot(h1.astype(w2_ref.dtype), w2_ref[...],
                 preferred_element_type=jnp.float32) + b2_ref[...]
    h2 = jnp.maximum(h2, 0.0)
    out = jnp.dot(h2.astype(w3_ref.dtype), w3_ref[...],
                  preferred_element_type=jnp.float32) + b3_ref[...]
    o_ref[...] = out.astype(o_ref.dtype)


def qnetwork_forward(state, params, *, tile_b=256, matmul_dtype=jnp.bfloat16):
    """state: [B, state_size] -> [B, action_size] float32."""
    w1, b1, w2, b2, w3, b3 = params
    B, S = state.shape
    H = w1.shape[1]
    A = w3.shape[1]

    # Lane-dense output: pad the final output dim to a multiple of 128 so the
    # kernel emits unmasked full-width stores; slice real columns afterwards.
    A_pad = _round_up(A, LANE)
    if A_pad != A:
        w3 = jnp.pad(w3, ((0, 0), (0, A_pad - A)))
        b3 = jnp.pad(b3, ((0, 0), (0, A_pad - A)))

    # Batch tile: multiple of 8 sublanes; pad B so every grid step is full.
    TILE_B = min(_round_up(B, 8), tile_b)
    B_pad = _round_up(B, TILE_B)
    if B_pad != B:
        state = jnp.pad(state, ((0, B_pad - B), (0, 0)))

    # bf16 matmul operands, f32 biases (bias + ReLU stay on the f32 VPU path).
    x = state.astype(matmul_dtype)
    w1, w2, w3 = (w.astype(matmul_dtype) for w in (w1, w2, w3))
    b1, b2, b3 = (b.astype(jnp.float32) for b in (b1, b2, b3))

    grid = (B_pad // TILE_B,)
    const = lambda i: (0, 0)  # weights/biases: same block every step -> resident
    in_specs = [
        pl.BlockSpec((TILE_B, S), lambda i: (i, 0)),  # streamed batch tile
        pl.BlockSpec((S, H), const),
        pl.BlockSpec((1, H), const),
        pl.BlockSpec((H, H), const),
        pl.BlockSpec((1, H), const),
        pl.BlockSpec((H, A_pad), const),
        pl.BlockSpec((1, A_pad), const),
    ]
    out_specs = pl.BlockSpec((TILE_B, A_pad), lambda i: (i, 0))

    isz = jnp.dtype(matmul_dtype).itemsize
    cost = pl.CostEstimate(
        flops=2 * B_pad * (S * H + H * H + H * A_pad),
        transcendentals=0,
        bytes_accessed=(B_pad * S * isz                       # streamed input
                        + B_pad * A_pad * 4                   # f32 output
                        + (S * H + H * H + H * A_pad) * isz   # weights
                        + (2 * H + A_pad) * 4),               # biases
    )

    out_padded = pl.pallas_call(
        qnetwork_kernel,
        out_shape=jax.ShapeDtypeStruct((B_pad, A_pad), jnp.float32),
        grid=grid,
        in_specs=in_specs,
        out_specs=out_specs,
        compiler_params=pltpu.CompilerParams(
            dimension_semantics=("parallel",)),
        cost_estimate=cost,
    )(x, w1, b1, w2, b2, w3, b3)

    return out_padded[:B, :A]


def init_params(key, state_size, action_size, hidden_size=128):
    """Mimics PyTorch nn.Linear default init: U(-1/sqrt(fan_in), +1/sqrt(fan_in))."""
    ks = jax.random.split(key, 6)

    def linear(kw, kb, fan_in, fan_out):
        bound = 1.0 / jnp.sqrt(jnp.float32(fan_in))
        # stored as [in, out] (transposed vs. PyTorch's [out, in])
        w = jax.random.uniform(kw, (fan_in, fan_out), jnp.float32, -bound, bound)
        b = jax.random.uniform(kb, (1, fan_out), jnp.float32, -bound, bound)
        return w, b

    w1, b1 = linear(ks[0], ks[1], state_size, hidden_size)
    w2, b2 = linear(ks[2], ks[3], hidden_size, hidden_size)
    w3, b3 = linear(ks[4], ks[5], hidden_size, action_size)
    return (w1, b1, w2, b2, w3, b3)


def qnetwork_reference(state, params, matmul_dtype=jnp.bfloat16):
    """Pure-JAX reference with the same bf16-matmul / f32-accumulate recipe."""
    w1, b1, w2, b2, w3, b3 = params
    x = state.astype(matmul_dtype)
    h = jnp.dot(x, w1.astype(matmul_dtype),
                preferred_element_type=jnp.float32) + b1
    h = jnp.maximum(h, 0.0)
    h = jnp.dot(h.astype(matmul_dtype), w2.astype(matmul_dtype),
                preferred_element_type=jnp.float32) + b2
    h = jnp.maximum(h, 0.0)
    return jnp.dot(h.astype(matmul_dtype), w3.astype(matmul_dtype),
                   preferred_element_type=jnp.float32) + b3


if __name__ == "__main__":
    key = jax.random.PRNGKey(0)
    k_param, k_state = jax.random.split(key)

    batch = 2
    state_size = 8
    action_size = 4
    hidden_size = 32

    params = init_params(k_param, state_size, action_size, hidden_size)
    state = jax.random.normal(k_state, (batch, state_size), jnp.float32)

    out = qnetwork_forward(state, params)
    out = jax.block_until_ready(out)

    ref = qnetwork_reference(state, params)
    assert out.shape == (batch, action_size)
    assert jnp.allclose(out, ref, atol=1e-3, rtol=1e-3)

    print("KERNEL_OK")
</pallas_src>

<mosaic_0001>
module attributes {stable_mosaic.version = 11 : i64} {
  func.func @qnetwork_kernel(%arg0: i32, %arg1: memref<8x8xbf16, #tpu.memory_space<vmem>>, %arg2: memref<8x32xbf16, #tpu.memory_space<vmem>>, %arg3: memref<1x32xf32, #tpu.memory_space<vmem>>, %arg4: memref<32x32xbf16, #tpu.memory_space<vmem>>, %arg5: memref<1x32xf32, #tpu.memory_space<vmem>>, %arg6: memref<32x128xbf16, #tpu.memory_space<vmem>>, %arg7: memref<1x128xf32, #tpu.memory_space<vmem>>, %arg8: memref<8x128xf32, #tpu.memory_space<vmem>>) attributes {dimension_semantics = [#tpu.dimension_semantics<parallel>], iteration_bounds = array<i64: 1>, scalar_prefetch = 0 : i64, scratch_operands = 0 : i64, tpu.core_type = #tpu.core_type<tc>, window_params = [{transform_indices = @transform_0, window_bounds = array<i64: 8, 8>}, {pipeline_mode = #tpu.pipeline_mode<synchronous>, transform_indices = @transform_1, window_bounds = array<i64: 8, 32>}, {pipeline_mode = #tpu.pipeline_mode<synchronous>, transform_indices = @transform_2, window_bounds = array<i64: 1, 32>}, {pipeline_mode = #tpu.pipeline_mode<synchronous>, transform_indices = @transform_3, window_bounds = array<i64: 32, 32>}, {pipeline_mode = #tpu.pipeline_mode<synchronous>, transform_indices = @transform_4, window_bounds = array<i64: 1, 32>}, {pipeline_mode = #tpu.pipeline_mode<synchronous>, transform_indices = @transform_5, window_bounds = array<i64: 32, 128>}, {pipeline_mode = #tpu.pipeline_mode<synchronous>, transform_indices = @transform_6, window_bounds = array<i64: 1, 128>}, {transform_indices = @transform_7, window_bounds = array<i64: 8, 128>}]} {
    %c0 = arith.constant 0 : index
    %c0_0 = arith.constant 0 : index
    %0 = vector.load %arg1[%c0, %c0_0] : memref<8x8xbf16, #tpu.memory_space<vmem>>, vector<8x8xbf16>
    %c0_1 = arith.constant 0 : index
    %c0_2 = arith.constant 0 : index
    %1 = vector.load %arg2[%c0_1, %c0_2] : memref<8x32xbf16, #tpu.memory_space<vmem>>, vector<8x32xbf16>
    %cst = arith.constant dense<0.000000e+00> : vector<8x32xf32>
    %2 = tpu.matmul %0, %1, %cst {dimension_numbers = #tpu.dot_dimension_numbers<[1], [0], [0], [1], [0, 0, 1, 1], [], []>} : vector<8x8xbf16>, vector<8x32xbf16>, vector<8x32xf32> -> vector<8x32xf32>
    %c0_3 = arith.constant 0 : index
    %c0_4 = arith.constant 0 : index
    %3 = vector.load %arg3[%c0_3, %c0_4] : memref<1x32xf32, #tpu.memory_space<vmem>>, vector<1x32xf32>
    %4 = vector.broadcast %3 : vector<1x32xf32> to vector<8x32xf32>
    %5 = arith.addf %2, %4 : vector<8x32xf32>
    %cst_5 = arith.constant 0.000000e+00 : f32
    %6 = vector.broadcast %cst_5 : f32 to vector<8x32xf32>
    %7 = arith.maximumf %5, %6 : vector<8x32xf32>
    %8 = arith.truncf %7 : vector<8x32xf32> to vector<8x32xbf16>
    %c0_6 = arith.constant 0 : index
    %c0_7 = arith.constant 0 : index
    %9 = vector.load %arg4[%c0_6, %c0_7] : memref<32x32xbf16, #tpu.memory_space<vmem>>, vector<32x32xbf16>
    %cst_8 = arith.constant dense<0.000000e+00> : vector<8x32xf32>
    %10 = tpu.matmul %8, %9, %cst_8 {dimension_numbers = #tpu.dot_dimension_numbers<[1], [0], [0], [1], [0, 0, 1, 1], [], []>} : vector<8x32xbf16>, vector<32x32xbf16>, vector<8x32xf32> -> vector<8x32xf32>
    %c0_9 = arith.constant 0 : index
    %c0_10 = arith.constant 0 : index
    %11 = vector.load %arg5[%c0_9, %c0_10] : memref<1x32xf32, #tpu.memory_space<vmem>>, vector<1x32xf32>
    %12 = vector.broadcast %11 : vector<1x32xf32> to vector<8x32xf32>
    %13 = arith.addf %10, %12 : vector<8x32xf32>
    %cst_11 = arith.constant 0.000000e+00 : f32
    %14 = vector.broadcast %cst_11 : f32 to vector<8x32xf32>
    %15 = arith.maximumf %13, %14 : vector<8x32xf32>
    %16 = arith.truncf %15 : vector<8x32xf32> to vector<8x32xbf16>
    %c0_12 = arith.constant 0 : index
    %c0_13 = arith.constant 0 : index
    %17 = vector.load %arg6[%c0_12, %c0_13] : memref<32x128xbf16, #tpu.memory_space<vmem>>, vector<32x128xbf16>
    %cst_14 = arith.constant dense<0.000000e+00> : vector<8x128xf32>
    %18 = tpu.matmul %16, %17, %cst_14 {dimension_numbers = #tpu.dot_dimension_numbers<[1], [0], [0], [1], [0, 0, 1, 1], [], []>} : vector<8x32xbf16>, vector<32x128xbf16>, vector<8x128xf32> -> vector<8x128xf32>
    %c0_15 = arith.constant 0 : index
    %c0_16 = arith.constant 0 : index
    %19 = vector.load %arg7[%c0_15, %c0_16] : memref<1x128xf32, #tpu.memory_space<vmem>>, vector<1x128xf32>
    %20 = vector.broadcast %19 : vector<1x128xf32> to vector<8x128xf32>
    %21 = arith.addf %18, %20 : vector<8x128xf32>
    %c0_17 = arith.constant 0 : index
    %c0_18 = arith.constant 0 : index
    %22 = vector.load %arg8[%c0_17, %c0_18] : memref<8x128xf32, #tpu.memory_space<vmem>>, vector<8x128xf32>
    tpu.vector_store %arg8[%c0_17, %c0_18], %21 {strides = array<i32>} : memref<8x128xf32, #tpu.memory_space<vmem>>, vector<8x128xf32>,
    return
  }
  func.func @transform_0(%arg0: i32) -> (i32, i32) {
    %c0_i32 = arith.constant 0 : i32
    %c0_i32_0 = arith.constant 0 : i32
    return %arg0, %c0_i32 : i32, i32
  }
  func.func @transform_1(%arg0: i32) -> (i32, i32) {
    %c0_i32 = arith.constant 0 : i32
    %c0_i32_0 = arith.constant 0 : i32
    %c0_i32_1 = arith.constant 0 : i32
    return %c0_i32, %c0_i32_0 : i32, i32
  }
  func.func @transform_2(%arg0: i32) -> (i32, i32) {
    %c0_i32 = arith.constant 0 : i32
    %c0_i32_0 = arith.constant 0 : i32
    %c0_i32_1 = arith.constant 0 : i32
    return %c0_i32, %c0_i32_0 : i32, i32
  }
  func.func @transform_3(%arg0: i32) -> (i32, i32) {
    %c0_i32 = arith.constant 0 : i32
    %c0_i32_0 = arith.constant 0 : i32
    %c0_i32_1 = arith.constant 0 : i32
    return %c0_i32, %c0_i32_0 : i32, i32
  }
  func.func @transform_4(%arg0: i32) -> (i32, i32) {
    %c0_i32 = arith.constant 0 : i32
    %c0_i32_0 = arith.constant 0 : i32
    %c0_i32_1 = arith.constant 0 : i32
    return %c0_i32, %c0_i32_0 : i32, i32
  }
  func.func @transform_5(%arg0: i32) -> (i32, i32) {
    %c0_i32 = arith.constant 0 : i32
    %c0_i32_0 = arith.constant 0 : i32
    %c0_i32_1 = arith.constant 0 : i32
    return %c0_i32, %c0_i32_0 : i32, i32
  }
  func.func @transform_6(%arg0: i32) -> (i32, i32) {
    %c0_i32 = arith.constant 0 : i32
    %c0_i32_0 = arith.constant 0 : i32
    %c0_i32_1 = arith.constant 0 : i32
    return %c0_i32, %c0_i32_0 : i32, i32
  }
  func.func @transform_7(%arg0: i32) -> (i32, i32) {
    %c0_i32 = arith.constant 0 : i32
    %c0_i32_0 = arith.constant 0 : i32
    return %arg0, %c0_i32 : i32, i32
  }
}

</mosaic_0001>

<llo_original>
// kernel: tpu_custom_call.1
$region0: #{tpu_custom_call.1}
  #allocation0 [shape = 'u32[]', space=smem, size = 0x4, offset = 0x4, fixed_abs, tag = 'smem constant byte address 0x4 - core index']
  #allocation1 [shape = 'u32[72,128]{1,0:T(1,128)}', space=vmem, size = 0x9000, scoped, tag = 'internal scratch']
  %s0 = inlined_call_operand.hbm [shape: bf16[8,8], index: 0, kind: input, shape index: {}]
  %s1 = inlined_call_operand.hbm [shape: bf16[8,32], index: 1, kind: input, shape index: {}]
  %s2 = inlined_call_operand.vmem [shape: f32[1,32], index: 2, kind: input, shape index: {}]
  %s3 = inlined_call_operand.hbm [shape: bf16[32,32], index: 3, kind: input, shape index: {}]
  %s4 = inlined_call_operand.vmem [shape: f32[1,32], index: 4, kind: input, shape index: {}]
  %s5 = inlined_call_operand.hbm [shape: bf16[32,128], index: 5, kind: input, shape index: {}]
  %s6 = inlined_call_operand.vmem [shape: f32[1,128], index: 6, kind: input, shape index: {}]
  %s7 = inlined_call_operand.hbm [shape: f32[8,128], index: 7, kind: output, shape index: {}]
  %s8 = sld [smem:[#allocation0]]
  $region54: #{tpu_custom_call.1} parent=0
    _
  %s10 = ssub.s32 1, %s8
  %s11 = scalar_select 0, %s10, %s8
  $region1: #{tpu_custom_call.1} parent=0
    #allocation2 [shape = 'u8[2048]{0}', space=vmem, size = 0x800, scoped, tag = 'input window, operand 0, single buffered']
    #allocation3 [shape = 's32[1]{0}', space=sflag, size = 0x4, scoped, tag = 'scoped memory for tpu_custom_call.1']
    #allocation4 [shape = 's32[1]{0}', space=sflag, size = 0x4, scoped, tag = 'scoped memory for tpu_custom_call.1']
    #allocation5 [shape = 'u8[2048]{0}', space=vmem, size = 0x800, scoped, tag = 'input window, operand 1, single buffered']
    #allocation6 [shape = 's32[1]{0}', space=sflag, size = 0x4, scoped, tag = 'scoped memory for tpu_custom_call.1']
    #allocation7 [shape = 'u8[8192]{0}', space=vmem, size = 0x2000, scoped, tag = 'input window, operand 3, single buffered']
    #allocation8 [shape = 'u8[8192]{0}', space=vmem, size = 0x2000, scoped, tag = 'input window, operand 5, single buffered']
    #allocation9 [shape = 's32[1]{0}', space=sflag, size = 0x4, scoped, tag = 'scoped memory for tpu_custom_call.1']
    #allocation10 [shape = 'u8[4096]{0}', space=vmem, size = 0x1000, scoped, tag = 'output window, operand 0, single buffered']
    %12 = vsyncpa [#allocation3], 0
    %13 = vsyncpa [#allocation6], 0
    %14 = vsyncpa [#allocation9], 0
    %15 = vsyncpa [#allocation4], 0
    // Predicated region
    $region2: #{tpu_custom_call.1} parent=1 // pred_check
      _
    $region3: #{tpu_custom_call.1} parent=1 // pred_check_branch
      %17 = sbr.rel (0) target = $region5
    $region4: #{tpu_custom_call.1} parent=1 // pred_region
      %19 = vsyncadd [#allocation3], 0
      %s21 = sshll.u32 %s0, 4
      %s22 = int_to_ptr.hbm [resolvable:$true] %s21
      %s23 = sshll.u32 [#allocation2], 4
      %s24 = int_to_ptr.vmem [resolvable:$true] %s23
      %26 = dma.hbm_to_vmem [thread:$0]  %s22, 64, %s24, [#allocation3]
    $region5: #{tpu_custom_call.1} parent=1 // pred_fallthru
      _
    // Predicated region
    $region6: #{tpu_custom_call.1} parent=1 // pred_check
      _
    $region7: #{tpu_custom_call.1} parent=1 // pred_check_branch
      %28 = sbr.rel (0) target = $region9
    $region8: #{tpu_custom_call.1} parent=1 // pred_region
      %30 = vsyncadd [#allocation6], 0
      %s32 = sshll.u32 %s1, 4
      %s33 = int_to_ptr.hbm [resolvable:$true] %s32
      %s34 = sshll.u32 [#allocation5], 4
      %s35 = int_to_ptr.vmem [resolvable:$true] %s34
      %37 = dma.hbm_to_vmem [thread:$0]  %s33, 64, %s35, [#allocation6]
    $region9: #{tpu_custom_call.1} parent=1 // pred_fallthru
      _
    // Predicated region
    $region10: #{tpu_custom_call.1} parent=1 // pred_check
      _
    $region11: #{tpu_custom_call.1} parent=1 // pred_check_branch
      %39 = sbr.rel (0) target = $region13
    $region12: #{tpu_custom_call.1} parent=1 // pred_region
      _
    $region13: #{tpu_custom_call.1} parent=1 // pred_fallthru
      _
    // Predicated region
    $region14: #{tpu_custom_call.1} parent=1 // pred_check
      _
    $region15: #{tpu_custom_call.1} parent=1 // pred_check_branch
      %41 = sbr.rel (0) target = $region17
    $region16: #{tpu_custom_call.1} parent=1 // pred_region
      %43 = vsyncadd [#allocation6], 0
      %s44 = sshll.u32 %s3, 4
      %s45 = int_to_ptr.hbm [resolvable:$true] %s44
      %s46 = sshll.u32 [#allocation7], 4
      %s47 = int_to_ptr.vmem [resolvable:$true] %s46
      %52 = dma.hbm_to_vmem [thread:$0]  %s45, 256, %s47, [#allocation6], 64, 64, 4
    $region17: #{tpu_custom_call.1} parent=1 // pred_fallthru
      _
    // Predicated region
    $region18: #{tpu_custom_call.1} parent=1 // pred_check
      _
    $region19: #{tpu_custom_call.1} parent=1 // pred_check_branch
      %54 = sbr.rel (0) target = $region21
    $region20: #{tpu_custom_call.1} parent=1 // pred_region
      _
    $region21: #{tpu_custom_call.1} parent=1 // pred_fallthru
      _
    // Predicated region
    $region22: #{tpu_custom_call.1} parent=1 // pred_check
      _
    $region23: #{tpu_custom_call.1} parent=1 // pred_check_branch
      %56 = sbr.rel (0) target = $region25
    $region24: #{tpu_custom_call.1} parent=1 // pred_region
      %58 = vsyncadd [#allocation9], 0
      %s59 = sshll.u32 %s5, 4
      %s60 = int_to_ptr.hbm [resolvable:$true] %s59
      %s61 = sshll.u32 [#allocation8], 4
      %s62 = int_to_ptr.vmem [resolvable:$true] %s61
      %67 = dma.hbm_to_vmem [thread:$0]  %s60, 256, %s62, [#allocation9], 64, 64, 4
    $region25: #{tpu_custom_call.1} parent=1 // pred_fallthru
      _
    // Predicated region
    $region26: #{tpu_custom_call.1} parent=1 // pred_check
      _
    $region27: #{tpu_custom_call.1} parent=1 // pred_check_branch
      %69 = sbr.rel (0) target = $region29
    $region28: #{tpu_custom_call.1} parent=1 // pred_region
      _
    $region29: #{tpu_custom_call.1} parent=1 // pred_fallthru
      _
    // Predicated region
    $region30: #{tpu_custom_call.1} parent=1 // pred_check
      _
    $region31: #{tpu_custom_call.1} parent=1 // pred_check_branch
      %71 = sbr.rel (0) target = $region33
    $region32: #{tpu_custom_call.1} parent=1 // pred_region
      %73 = dma.done [#allocation3], 64
    $region33: #{tpu_custom_call.1} parent=1 // pred_fallthru
      _
    // Predicated region
    $region34: #{tpu_custom_call.1} parent=1 // pred_check
      _
    $region35: #{tpu_custom_call.1} parent=1 // pred_check_branch
      %75 = sbr.rel (0) target = $region37
    $region36: #{tpu_custom_call.1} parent=1 // pred_region
      %77 = dma.done [#allocation6], 64
    $region37: #{tpu_custom_call.1} parent=1 // pred_fallthru
      _
    // Predicated region
    $region38: #{tpu_custom_call.1} parent=1 // pred_check
      _
    $region39: #{tpu_custom_call.1} parent=1 // pred_check_branch
      %79 = sbr.rel (0) target = $region41
    $region40: #{tpu_custom_call.1} parent=1 // pred_region
      %81 = dma.done [#allocation6], 256
    $region41: #{tpu_custom_call.1} parent=1 // pred_fallthru
      _
    // Predicated region
    $region42: #{tpu_custom_call.1} parent=1 // pred_check
      _
    $region43: #{tpu_custom_call.1} parent=1 // pred_check_branch
      %83 = sbr.rel (0) target = $region45
    $region44: #{tpu_custom_call.1} parent=1 // pred_region
      %85 = dma.done [#allocation9], 256
    $region45: #{tpu_custom_call.1} parent=1 // pred_fallthru
      _
    %v87 = vld [vmem:[#allocation2] sm:$0xf]
    %v88 = vld [vmem:[#allocation5] sm:$0xf]
    %v89 = vld [vmem:[%s2] sm:$0x1]
    %v91 = vperm.slane %v89, 0
    %vm93 = vcmask 64512
    %v95 = vsel %vm93, %v87, 0
    %vm97 = vcmask 1043456
    %v99 = vsel %vm97, %v88, 0
    %101 = vmatpush.bf16.msra.mxu0 0
    %102 = vmatpush.bf16.msra.mxu0 0
    %103 = vmatpush.bf16.msra.mxu0 0
    %104 = vmatpush.bf16.msra.mxu0 0
    %105 = vmatpush.bf16.msra.mxu0 0
    %106 = vmatpush.bf16.msra.mxu0 0
    %107 = vmatpush.bf16.msra.mxu0 0
    %108 = vmatpush.bf16.msra.mxu0 %v99
    %109 = vmatmul.bf16.gmra.mxu0 %v95
    %v110 = vpop.f32.mrf.mxu0
    %v111 = vadd.f32 %v91, %v110
    %v112 = vpop.f32.mrf.mxu0
    %113 = vdwg.mxu0
    %v114 = vmax.f32 %v111, 0.0
    %v115 = vpack.c.bf16 %v114, %v114
    %v116 = vld [vmem:[#allocation7] sm:$0xf]
    %v117 = vld [vmem:[#allocation7 + $0x4] sm:$0xf]
    %v118 = vld [vmem:[#allocation7 + $0x8] sm:$0xf]
    %v119 = vld [vmem:[#allocation7 + $0xc] sm:$0xf]
    %v120 = vld [vmem:[%s4] sm:$0x1]
    %v122 = vperm.slane %v120, 0
    %v128 = vunpack.c.l.b16 %v116
    %v129 = vunpack.c.l.b16 %v117
    %v130 = vunpack.c.l.b16 %v118
    %v131 = vunpack.c.l.b16 %v119
    %v132 = vpack.c.b16 %v129, %v128
    %v133 = vpack.c.b16 %v131, %v130
    %vm136 = vcmask 261120
    %v138 = vsel %vm136, %v115, 0
    %140 = vmatpush.bf16.msra.mxu0 0
    %141 = vmatpush.bf16.msra.mxu0 0
    %142 = vmatpush.bf16.msra.mxu0 0
    %143 = vmatpush.bf16.msra.mxu0 0
    %144 = vmatpush.bf16.msra.mxu0 0
    %145 = vmatpush.bf16.msra.mxu0 0
    %146 = vmatpush.bf16.msra.mxu0 %v133
    %147 = vmatpush.bf16.msra.mxu0 %v132
    %148 = vmatmul.bf16.gmra.mxu0 %v138
    %v149 = vpop.f32.mrf.mxu0
    %v150 = vadd.f32 %v122, %v149
    %v151 = vpop.f32.mrf.mxu0
    %152 = vdwg.mxu0
    %v153 = vmax.f32 %v150, 0.0
    %v154 = vpack.c.bf16 %v153, %v153
    %v155 = vld [vmem:[#allocation8] sm:$0xf]
    %v156 = vld [vmem:[#allocation8 + $0x4] sm:$0xf]
    %v157 = vld [vmem:[#allocation8 + $0x8] sm:$0xf]
    %v158 = vld [vmem:[#allocation8 + $0xc] sm:$0xf]
    %v159 = vld [vmem:[%s6] sm:$0x1]
    %v161 = vperm.slane %v159, 0
    %v167 = vunpack.c.l.b16 %v155
    %v168 = vunpack.c.l.b16 %v156
    %v169 = vunpack.c.l.b16 %v157
    %v170 = vunpack.c.l.b16 %v158
    %v171 = vpack.c.b16 %v168, %v167
    %v172 = vpack.c.b16 %v170, %v169
    %v176 = vsel %vm136, %v154, 0
    %178 = vmatpush.bf16.msra.mxu0 0
    %179 = vmatpush.bf16.msra.mxu0 0
    %180 = vmatpush.bf16.msra.mxu0 0
    %181 = vmatpush.bf16.msra.mxu0 0
    %182 = vmatpush.bf16.msra.mxu0 0
    %183 = vmatpush.bf16.msra.mxu0 0
    %184 = vmatpush.bf16.msra.mxu0 %v172
    %185 = vmatpush.bf16.msra.mxu0 %v171
    %186 = vmatmul.bf16.gmra.mxu0 %v176
    %v187 = vpop.f32.mrf.mxu0
    %v188 = vadd.f32 %v161, %v187
    %v189 = vpop.f32.mrf.mxu0
    %190 = vdwg.mxu0
    %191 = vst [vmem:[#allocation10] sm:$0xff] %v188
    // Predicated region
    $region46: #{tpu_custom_call.1} parent=1 // pred_check
      _
    $region47: #{tpu_custom_call.1} parent=1 // pred_check_branch
      %193 = sbr.rel (0) target = $region49
    $region48: #{tpu_custom_call.1} parent=1 // pred_region
      %195 = vsyncadd [#allocation4], 0
      %s197 = sshll.u32 [#allocation10], 4
      %s198 = int_to_ptr.vmem [resolvable:$true] %s197
      %s199 = sshll.u32 %s7, 4
      %s200 = int_to_ptr.hbm [resolvable:$true] %s199
      %202 = dma.vmem_to_hbm [thread:$0]  %s198, 128, %s200, [#allocation4]
    $region49: #{tpu_custom_call.1} parent=1 // pred_fallthru
      _
    // Predicated region
    $region50: #{tpu_custom_call.1} parent=1 // pred_check
      _
    $region51: #{tpu_custom_call.1} parent=1 // pred_check_branch
      %204 = sbr.rel (0) target = $region53
    $region52: #{tpu_custom_call.1} parent=1 // pred_region
      %206 = dma.done [#allocation4], 128
    $region53: #{tpu_custom_call.1} parent=1 // pred_fallthru
      _
    %207 = vsyncpa [#allocation3], 1
    %208 = vsyncpa [#allocation6], 1
    %209 = vsyncpa [#allocation9], 1
    %210 = vsyncpa [#allocation4], 1

</llo_original>
